<compile_context>
chip_gen: v6e
topology: v6e:2x2x1
jax: 0.10.0
libtpu: 0.0.40
codegen_flags: <defaults>
</compile_context>

<pallas_src>
import numpy as np
import jax
import jax.numpy as jnp
from jax.experimental import pallas as pl
from jax.experimental.pallas import tpu as pltpu


def fc_decoder_kernel(x_ref, w_ref, b_ref, logits_ref, preds_ref):
    # x_ref:      (TM, H)   float32
    # w_ref:      (H, Lp)   float32   (transposed vs. torch Linear, lane-padded)
    # b_ref:      (1, Lp)   float32   (padded lanes hold a very negative value)
    # logits_ref: (TM, Lp)  float32
    # preds_ref:  (TM, 1)   int32
    logits = jnp.dot(x_ref[...], w_ref[...],
                     preferred_element_type=jnp.float32) + b_ref[...]
    logits_ref[...] = logits

    # argmax over the label axis with first-occurrence tie-breaking
    # (softmax dropped: monotonic, so argmax(softmax(x)) == argmax(x); the
    # padded lanes carry -inf-ish bias and can never win).
    maxv = jnp.max(logits, axis=-1, keepdims=True)
    idx = jax.lax.broadcasted_iota(jnp.int32, logits.shape, dimension=1)
    big = jnp.iinfo(jnp.int32).max
    cand = jnp.where(logits == maxv, idx, big)
    preds_ref[...] = jnp.min(cand, axis=-1, keepdims=True).astype(jnp.int32)


def fc_decoder_forward(x, w, bias, *, tm=512):
    """x: (B, S, H) f32, w: (L, H) f32 (torch Linear layout), bias: (L,) f32.

    Returns (logits (B,S,L) f32, preds (B,S) int32).
    """
    # TODO(synk): nn.Dropout is identity in eval mode; no dropout mask applied.
    B, S, H = x.shape
    L = w.shape[0]
    N = B * S

    # --- lane-dense label axis: pad L up to a multiple of 128 -------------
    Lp = ((L + 127) // 128) * 128
    w_t = jnp.transpose(w)                                  # (H, L)
    w_t = jnp.pad(w_t, ((0, 0), (0, Lp - L)))               # zero weight cols
    neg = jnp.finfo(jnp.float32).min
    bias_p = jnp.concatenate(
        [bias.astype(jnp.float32), jnp.full((Lp - L,), neg, jnp.float32)]
    ).reshape(1, Lp)                                        # padded lanes never win

    # --- flatten rows in the wrapper and pad to a multiple of the tile ----
    x2 = x.reshape(N, H)
    tm_eff = min(tm, ((N + 7) // 8) * 8)                    # sublane-aligned tile
    Np = pl.cdiv(N, tm_eff) * tm_eff
    if Np != N:
        x2 = jnp.pad(x2, ((0, Np - N), (0, 0)))
    grid = (Np // tm_eff,)

    logits_p, preds_p = pl.pallas_call(
        fc_decoder_kernel,
        out_shape=(
            jax.ShapeDtypeStruct((Np, Lp), jnp.float32),
            jax.ShapeDtypeStruct((Np, 1), jnp.int32),
        ),
        grid=grid,
        in_specs=[
            pl.BlockSpec((tm_eff, H), lambda i: (i, 0)),    # streamed rows
            pl.BlockSpec((H, Lp), lambda i: (0, 0)),        # resident weight
            pl.BlockSpec((1, Lp), lambda i: (0, 0)),        # resident bias
        ],
        out_specs=(
            pl.BlockSpec((tm_eff, Lp), lambda i: (i, 0)),
            pl.BlockSpec((tm_eff, 1), lambda i: (i, 0)),
        ),
        compiler_params=pltpu.CompilerParams(
            dimension_semantics=("parallel",),              # megacore-shardable
        ),
    )(x2, w_t, bias_p)

    logits = logits_p[:N, :L].reshape(B, S, L)
    preds = preds_p[:N, 0].reshape(B, S)
    return logits, preds


if __name__ == "__main__":
    # Small shapes consistent with the module: batch=2, seq=8, hidden=32, labels=8.
    B, S, H, L = 2, 8, 32, 8

    key = jax.random.PRNGKey(0)
    kx, kw, kb = jax.random.split(key, 3)

    x = jax.random.normal(kx, (B, S, H), dtype=jnp.float32)
    w = jax.random.normal(kw, (L, H), dtype=jnp.float32) * 0.05   # torch layout (L, H)
    bias = jax.random.normal(kb, (L,), dtype=jnp.float32) * 0.05

    logits, preds = fc_decoder_forward(x, w, bias)
    logits = jax.block_until_ready(logits)
    preds = jax.block_until_ready(preds)

    # Reference check in plain JAX (same semantics as the torch module).
    ref_logits = jnp.einsum("bsh,lh->bsl", x, w) + bias
    ref_preds = jnp.argmax(jax.nn.softmax(ref_logits, axis=2), axis=2)
    assert jnp.allclose(logits, ref_logits, atol=1e-4, rtol=1e-4)
    assert jnp.array_equal(preds, ref_preds.astype(jnp.int32))

    # Module returns (logits, preds-as-python-list)
    preds_list = np.asarray(preds).tolist()
    assert isinstance(preds_list, list)

    print("KERNEL_OK")
</pallas_src>

<mosaic_0001>
module attributes {stable_mosaic.version = 11 : i64} {
  func.func @fc_decoder_kernel(%arg0: i32, %arg1: memref<16x32xf32, #tpu.memory_space<vmem>>, %arg2: memref<32x128xf32, #tpu.memory_space<vmem>>, %arg3: memref<1x128xf32, #tpu.memory_space<vmem>>, %arg4: memref<16x128xf32, #tpu.memory_space<vmem>>, %arg5: memref<16x1xi32, #tpu.memory_space<vmem>>) attributes {dimension_semantics = [#tpu.dimension_semantics<parallel>], iteration_bounds = array<i64: 1>, scalar_prefetch = 0 : i64, scratch_operands = 0 : i64, tpu.core_type = #tpu.core_type<tc>, window_params = [{transform_indices = @transform_0, window_bounds = array<i64: 16, 32>}, {pipeline_mode = #tpu.pipeline_mode<synchronous>, transform_indices = @transform_1, window_bounds = array<i64: 32, 128>}, {pipeline_mode = #tpu.pipeline_mode<synchronous>, transform_indices = @transform_2, window_bounds = array<i64: 1, 128>}, {transform_indices = @transform_3, window_bounds = array<i64: 16, 128>}, {transform_indices = @transform_4, window_bounds = array<i64: 16, 1>}]} {
    %c0 = arith.constant 0 : index
    %c0_0 = arith.constant 0 : index
    %0 = vector.load %arg1[%c0, %c0_0] : memref<16x32xf32, #tpu.memory_space<vmem>>, vector<16x32xf32>
    %c0_1 = arith.constant 0 : index
    %c0_2 = arith.constant 0 : index
    %1 = vector.load %arg2[%c0_1, %c0_2] : memref<32x128xf32, #tpu.memory_space<vmem>>, vector<32x128xf32>
    %cst = arith.constant dense<0.000000e+00> : vector<16x128xf32>
    %2 = tpu.matmul %0, %1, %cst {dimension_numbers = #tpu.dot_dimension_numbers<[1], [0], [0], [1], [0, 0, 1, 1], [], []>} : vector<16x32xf32>, vector<32x128xf32>, vector<16x128xf32> -> vector<16x128xf32>
    %c0_3 = arith.constant 0 : index
    %c0_4 = arith.constant 0 : index
    %3 = vector.load %arg3[%c0_3, %c0_4] : memref<1x128xf32, #tpu.memory_space<vmem>>, vector<1x128xf32>
    %4 = vector.broadcast %3 : vector<1x128xf32> to vector<16x128xf32>
    %5 = arith.addf %2, %4 : vector<16x128xf32>
    %c0_5 = arith.constant 0 : index
    %c0_6 = arith.constant 0 : index
    %6 = vector.load %arg4[%c0_5, %c0_6] : memref<16x128xf32, #tpu.memory_space<vmem>>, vector<16x128xf32>
    tpu.vector_store %arg4[%c0_5, %c0_6], %5 {strides = array<i32>} : memref<16x128xf32, #tpu.memory_space<vmem>>, vector<16x128xf32>,
    %cst_7 = arith.constant dense<0xFF800000> : vector<16xf32>
    %7 = vector.multi_reduction <maximumf>, %5, %cst_7 [1] : vector<16x128xf32> to vector<16xf32>
    %8 = vector.shape_cast %7 : vector<16xf32> to vector<16x1xf32>
    %9 = tpu.iota {dimensions = array<i32: 1>} : vector<16x128xi32>
    %10 = vector.broadcast %8 : vector<16x1xf32> to vector<16x128xf32>
    %11 = arith.cmpf oeq, %5, %10 : vector<16x128xf32>
    %c2147483647_i32 = arith.constant 2147483647 : i32
    %12 = vector.broadcast %c2147483647_i32 : i32 to vector<16x128xi32>
    %13 = arith.select %11, %9, %12 : vector<16x128xi1>, vector<16x128xi32>
    %cst_8 = arith.constant dense<2147483647> : vector<16xi32>
    %14 = vector.multi_reduction <minsi>, %13, %cst_8 [1] : vector<16x128xi32> to vector<16xi32>
    %15 = vector.shape_cast %14 : vector<16xi32> to vector<16x1xi32>
    %c0_9 = arith.constant 0 : index
    %c0_10 = arith.constant 0 : index
    %16 = vector.load %arg5[%c0_9, %c0_10] : memref<16x1xi32, #tpu.memory_space<vmem>>, vector<16x1xi32>
    tpu.vector_store %arg5[%c0_9, %c0_10], %15 {strides = array<i32>} : memref<16x1xi32, #tpu.memory_space<vmem>>, vector<16x1xi32>,
    return
  }
  func.func @transform_0(%arg0: i32) -> (i32, i32) {
    %c0_i32 = arith.constant 0 : i32
    %c0_i32_0 = arith.constant 0 : i32
    return %arg0, %c0_i32 : i32, i32
  }
  func.func @transform_1(%arg0: i32) -> (i32, i32) {
    %c0_i32 = arith.constant 0 : i32
    %c0_i32_0 = arith.constant 0 : i32
    %c0_i32_1 = arith.constant 0 : i32
    return %c0_i32, %c0_i32_0 : i32, i32
  }
  func.func @transform_2(%arg0: i32) -> (i32, i32) {
    %c0_i32 = arith.constant 0 : i32
    %c0_i32_0 = arith.constant 0 : i32
    %c0_i32_1 = arith.constant 0 : i32
    return %c0_i32, %c0_i32_0 : i32, i32
  }
  func.func @transform_3(%arg0: i32) -> (i32, i32) {
    %c0_i32 = arith.constant 0 : i32
    %c0_i32_0 = arith.constant 0 : i32
    return %arg0, %c0_i32 : i32, i32
  }
  func.func @transform_4(%arg0: i32) -> (i32, i32) {
    %c0_i32 = arith.constant 0 : i32
    %c0_i32_0 = arith.constant 0 : i32
    return %arg0, %c0_i32 : i32, i32
  }
}

</mosaic_0001>

<llo_original>
// kernel: tpu_custom_call.1
$region0: #{tpu_custom_call.1}
  #allocation0 [shape = 'u32[]', space=smem, size = 0x4, offset = 0x4, fixed_abs, tag = 'smem constant byte address 0x4 - core index']
  #allocation1 [shape = 'u32[144,128]{1,0:T(1,128)}', space=vmem, size = 0x12000, scoped, tag = 'internal scratch']
  %s0 = inlined_call_operand.hbm [shape: f32[16,32], index: 0, kind: input, shape index: {}]
  %s1 = inlined_call_operand.hbm [shape: f32[32,128], index: 1, kind: input, shape index: {}]
  %s2 = inlined_call_operand.vmem [shape: f32[1,128], index: 2, kind: input, shape index: {}]
  %s3 = inlined_call_operand.hbm [shape: f32[16,128], index: 3, kind: output, shape index: {0}]
  %s4 = inlined_call_operand.vmem [shape: s32[16,1], index: 4, kind: output, shape index: {1}]
  %5 = xla_tuple %s3, %s4
  %s6 = sld [smem:[#allocation0]]
  $region38: #{tpu_custom_call.1} parent=0
    _
  %s8 = ssub.s32 1, %s6
  %s9 = scalar_select 0, %s8, %s6
  $region1: #{tpu_custom_call.1} parent=0
    #allocation2 [shape = 'u8[8192]{0}', space=vmem, size = 0x2000, scoped, tag = 'input window, operand 0, single buffered']
    #allocation3 [shape = 's32[1]{0}', space=sflag, size = 0x4, scoped, tag = 'scoped memory for tpu_custom_call.1']
    #allocation4 [shape = 's32[1]{0}', space=sflag, size = 0x4, scoped, tag = 'scoped memory for tpu_custom_call.1']
    #allocation5 [shape = 'u8[16384]{0}', space=vmem, size = 0x4000, scoped, tag = 'input window, operand 1, single buffered']
    #allocation6 [shape = 's32[1]{0}', space=sflag, size = 0x4, scoped, tag = 'scoped memory for tpu_custom_call.1']
    #allocation7 [shape = 'u8[8192]{0}', space=vmem, size = 0x2000, scoped, tag = 'output window, operand 0, single buffered']
    %10 = vsyncpa [#allocation3], 0
    %11 = vsyncpa [#allocation6], 0
    %12 = vsyncpa [#allocation4], 0
    // Predicated region
    $region2: #{tpu_custom_call.1} parent=1 // pred_check
      _
    $region3: #{tpu_custom_call.1} parent=1 // pred_check_branch
      %14 = sbr.rel (0) target = $region5
    $region4: #{tpu_custom_call.1} parent=1 // pred_region
      %s16 = ssub.s32 256, 256
      %17 = vsyncadd [#allocation3], %s16
      %s18 = sshll.u32 [#allocation2], 4
      %s19 = int_to_ptr.vmem [resolvable:$true] %s18
      %24 = dma.hbm_to_vmem [thread:$0]  %s0, 256, %s19, [#allocation3], 128, 128, 8
    $region5: #{tpu_custom_call.1} parent=1 // pred_fallthru
      _
    // Predicated region
    $region6: #{tpu_custom_call.1} parent=1 // pred_check
      _
    $region7: #{tpu_custom_call.1} parent=1 // pred_check_branch
      %26 = sbr.rel (0) target = $region9
    $region8: #{tpu_custom_call.1} parent=1 // pred_region
      %s28 = ssub.s32 512, 512
      %29 = vsyncadd [#allocation6], %s28
      %s30 = sshll.u32 [#allocation5], 4
      %s31 = int_to_ptr.vmem [resolvable:$true] %s30
      %36 = dma.hbm_to_vmem [thread:$0]  %s1, 512, %s31, [#allocation6], 128, 128, 8
    $region9: #{tpu_custom_call.1} parent=1 // pred_fallthru
      _
    // Predicated region
    $region10: #{tpu_custom_call.1} parent=1 // pred_check
      _
    $region11: #{tpu_custom_call.1} parent=1 // pred_check_branch
      %38 = sbr.rel (0) target = $region13
    $region12: #{tpu_custom_call.1} parent=1 // pred_region
      _
    $region13: #{tpu_custom_call.1} parent=1 // pred_fallthru
      _
    // Predicated region
    $region14: #{tpu_custom_call.1} parent=1 // pred_check
      _
    $region15: #{tpu_custom_call.1} parent=1 // pred_check_branch
      %40 = sbr.rel (0) target = $region17
    $region16: #{tpu_custom_call.1} parent=1 // pred_region
      %41 = dma.done [#allocation3], 256
    $region17: #{tpu_custom_call.1} parent=1 // pred_fallthru
      _
    // Predicated region
    $region18: #{tpu_custom_call.1} parent=1 // pred_check
      _
    $region19: #{tpu_custom_call.1} parent=1 // pred_check_branch
      %43 = sbr.rel (0) target = $region21
    $region20: #{tpu_custom_call.1} parent=1 // pred_region
      %44 = dma.done [#allocation6], 512
    $region21: #{tpu_custom_call.1} parent=1 // pred_fallthru
      _
    %v45 = vld [vmem:[#allocation2] sm:$0xff]
    %v46 = vld [vmem:[#allocation2 + $0x8] sm:$0xff]
    %v47 = vld [vmem:[#allocation5] sm:$0xff]
    %v48 = vld [vmem:[#allocation5 + $0x8] sm:$0xff]
    %v49 = vld [vmem:[#allocation5 + $0x10] sm:$0xff]
    %v50 = vld [vmem:[#allocation5 + $0x18] sm:$0xff]
    %v51 = vld [vmem:[%s2] sm:$0x1]
    %v53 = vlaneseq
    %v54 = vshrl.u32 %v53, 7
    %v55 = vsub.s32 0, %v54
    %v56 = vrot.slane %v51, %v55
    %vm58 = vcmask 261120
    %v60 = vsel %vm58, %v45, 0
    %v63 = vsel %vm58, %v46, 0
    %65 = vmatprep.subr.mxu0 0.0
    %66 = vmatpush1.msra.mxu0 0.0
    %67 = vmatprep.subr.mxu0 0.0
    %68 = vmatpush1.msra.mxu0 0.0
    %69 = vmatprep.subr.mxu0 0.0
    %70 = vmatpush1.msra.mxu0 0.0
    %71 = vmatprep.subr.mxu0 0.0
    %72 = vmatpush1.msra.mxu0 0.0
    %73 = vmatprep.subr.mxu0 0.0
    %74 = vmatpush1.msra.mxu0 0.0
    %75 = vmatprep.subr.mxu0 0.0
    %76 = vmatpush1.msra.mxu0 0.0
    %77 = vmatprep.subr.mxu0 0.0
    %78 = vmatpush1.msra.mxu0 0.0
    %79 = vmatprep.subr.mxu0 0.0
    %80 = vmatpush1.msra.mxu0 0.0
    %81 = vmatprep.subr.mxu0 0.0
    %82 = vmatpush1.msra.mxu0 0.0
    %83 = vmatprep.subr.mxu0 0.0
    %84 = vmatpush1.msra.mxu0 0.0
    %85 = vmatprep.subr.mxu0 0.0
    %86 = vmatpush1.msra.mxu0 0.0
    %87 = vmatprep.subr.mxu0 0.0
    %88 = vmatpush1.msra.mxu0 0.0
    %89 = vmatprep.subr.mxu0 0.0
    %90 = vmatpush1.msra.mxu0 %v50
    %91 = vmatprep.subr.mxu0 0.0
    %92 = vmatpush1.msra.mxu0 %v49
    %93 = vmatprep.subr.mxu0 0.0
    %94 = vmatpush1.msra.mxu0 %v48
    %95 = vmatprep.subr.mxu0 0.0
    %96 = vmatpush1.msra.mxu0 %v47
    %97 = vmatprep.subr.mxu0 0.0
    %98 = vmatpush2.msra.mxu0 0.0
    %99 = vmatprep.subr.mxu0 0.0
    %100 = vmatpush2.msra.mxu0 0.0
    %101 = vmatprep.subr.mxu0 0.0
    %102 = vmatpush2.msra.mxu0 0.0
    %103 = vmatprep.subr.mxu0 0.0
    %104 = vmatpush2.msra.mxu0 0.0
    %105 = vmatprep.subr.mxu0 0.0
    %106 = vmatpush2.msra.mxu0 0.0
    %107 = vmatprep.subr.mxu0 0.0
    %108 = vmatpush2.msra.mxu0 0.0
    %109 = vmatprep.subr.mxu0 0.0
    %110 = vmatpush2.msra.mxu0 0.0
    %111 = vmatprep.subr.mxu0 0.0
    %112 = vmatpush2.msra.mxu0 0.0
    %113 = vmatprep.subr.mxu0 0.0
    %114 = vmatpush2.msra.mxu0 0.0
    %115 = vmatprep.subr.mxu0 0.0
    %116 = vmatpush2.msra.mxu0 0.0
    %117 = vmatprep.subr.mxu0 0.0
    %118 = vmatpush2.msra.mxu0 0.0
    %119 = vmatprep.subr.mxu0 0.0
    %120 = vmatpush2.msra.mxu0 0.0
    %121 = vmatprep.subr.mxu0 0.0
    %122 = vmatpush2.msra.mxu0 0.0
    %123 = vmatprep.subr.mxu0 0.0
    %124 = vmatpush2.msra.mxu0 0.0
    %125 = vmatprep.subr.mxu0 0.0
    %126 = vmatpush2.msra.mxu0 0.0
    %127 = vmatprep.subr.mxu0 0.0
    %128 = vmatpush2.msra.mxu0 0.0
    %129 = vmatprep.mubr.f32.mxu0 0.0
    %130 = vmatmul.mubr.f32.gmra.mxu0 %v60
    %v131 = vpop.f32.mrf.mxu0
    %v132 = vadd.f32 %v56, %v131
    %v133 = vpop.f32.mrf.mxu0
    %134 = vmatprep.mubr.f32.mxu0 0.0
    %135 = vmatmul.mubr.f32.gmra.mxu0 %v63
    %v136 = vpop.f32.mrf.mxu0
    %v137 = vadd.f32 %v56, %v136
    %v138 = vpop.f32.mrf.mxu0
    %139 = vdwg.mxu0
    %140 = vst [vmem:[#allocation7] sm:$0xff] %v132
    %141 = vst [vmem:[#allocation7 + $0x8] sm:$0xff] %v137
    %142 = vmax.xlane.f32.xlu0 %v132
    %v143 = vpop.xlane.xlu0 %142
    %144 = vmax.xlane.f32.xlu0 %v137
    %v145 = vpop.xlane.xlu0 %144
    %v146 = vlaneseq
    %v147 = vand.u32 %v146, 127
    %vm148 = vcmp.eq.f32.partialorder %v132, %v143
    %vm149 = vcmp.eq.f32.partialorder %v137, %v145
    %v150 = vsel %vm148, %v147, 2147483647
    %v151 = vsel %vm149, %v147, 2147483647
    %v152 = vand.u32 %v150, 65535
    %v153 = vshra.s32 %v150, 16
    %v154 = vcvt.s32.f32 %v152
    %v155 = vcvt.s32.f32 %v153
    %156 = vmin.xlane.f32.xlu0 %v155
    %v157 = vpop.xlane.xlu0 %156
    %vm158 = vcmp.eq.f32.partialorder %v155, %v157
    %v159 = vsel %vm158, %v154, inf
    %160 = vmin.xlane.f32.xlu0 %v159
    %v161 = vpop.xlane.xlu0 %160
    %v162 = vcvt.f32.s32 %v161
    %v163 = vcvt.f32.s32 %v157
    %v164 = vshll.u32 %v163, 16
    %v165 = vadd.s32 %v164, %v162
    %v166 = vand.u32 %v151, 65535
    %v167 = vshra.s32 %v151, 16
    %v168 = vcvt.s32.f32 %v166
    %v169 = vcvt.s32.f32 %v167
    %170 = vmin.xlane.f32.xlu0 %v169
    %v171 = vpop.xlane.xlu0 %170
    %vm172 = vcmp.eq.f32.partialorder %v169, %v171
    %v173 = vsel %vm172, %v168, inf
    %174 = vmin.xlane.f32.xlu0 %v173
    %v175 = vpop.xlane.xlu0 %174
    %v176 = vcvt.f32.s32 %v175
    %v177 = vcvt.f32.s32 %v171
    %v178 = vshll.u32 %v177, 16
    %v179 = vadd.s32 %v178, %v176
    %vm180 = vcmask 7168
    %181 = vst.msk [vmem:[%s4] sm:$0xff] %vm180, %v165
    %182 = vst.msk [vmem:[%s4 + $0x8] sm:$0xff] %vm180, %v179
    // Predicated region
    $region22: #{tpu_custom_call.1} parent=1 // pred_check
      _
    $region23: #{tpu_custom_call.1} parent=1 // pred_check_branch
      %184 = sbr.rel (0) target = $region25
    $region24: #{tpu_custom_call.1} parent=1 // pred_region
      %s186 = ssub.s32 256, 256
      %187 = vsyncadd [#allocation4], %s186
      %s188 = sshll.u32 [#allocation7], 4
      %s189 = int_to_ptr.vmem [resolvable:$true] %s188
      %194 = dma.vmem_to_hbm [thread:$0]  %s189, 256, %s3, [#allocation4], 128, 128, 8
    $region25: #{tpu_custom_call.1} parent=1 // pred_fallthru
      _
    // Predicated region
    $region26: #{tpu_custom_call.1} parent=1 // pred_check
      _
    $region27: #{tpu_custom_call.1} parent=1 // pred_check_branch
      %196 = sbr.rel (0) target = $region29
    $region28: #{tpu_custom_call.1} parent=1 // pred_region
      _
    $region29: #{tpu_custom_call.1} parent=1 // pred_fallthru
      _
    // Predicated region
    $region30: #{tpu_custom_call.1} parent=1 // pred_check
      _
    $region31: #{tpu_custom_call.1} parent=1 // pred_check_branch
      %198 = sbr.rel (0) target = $region33
    $region32: #{tpu_custom_call.1} parent=1 // pred_region
      %199 = dma.done [#allocation4], 256
    $region33: #{tpu_custom_call.1} parent=1 // pred_fallthru
      _
    // Predicated region
    $region34: #{tpu_custom_call.1} parent=1 // pred_check
      _
    $region35: #{tpu_custom_call.1} parent=1 // pred_check_branch
      %201 = sbr.rel (0) target = $region37
    $region36: #{tpu_custom_call.1} parent=1 // pred_region
      _
    $region37: #{tpu_custom_call.1} parent=1 // pred_fallthru
      _
    %202 = vsyncpa [#allocation3], 1
    %203 = vsyncpa [#allocation6], 1
    %204 = vsyncpa [#allocation4], 1

</llo_original>
